<compile_context>
chip_gen: v7x
topology: tpu7x:2x2x1
jax: 0.10.0
libtpu: 0.0.40
codegen_flags: <defaults>
</compile_context>

<pallas_src>
import functools
import numpy as np

import jax
import jax.numpy as jnp
from jax import lax
from jax.experimental import pallas as pl
from jax.experimental.pallas import tpu as pltpu


# ----------------------------------------------------------------------------
# Host-side quadrant resolution (pure numpy, mirrors torch.cat block layout).
# ----------------------------------------------------------------------------
def _resolve_quadrant(rows, cols, n, off_code, br_code):
    """Map (row, col) indices into a virtual 2n x 2n block matrix
       [[0, X.T], [X, BR]] onto (src_code, r, c) over the n x n sources."""
    rows = np.asarray(rows, dtype=np.int64)
    cols = np.asarray(cols, dtype=np.int64)
    if rows.size:
        assert rows.min() >= 0 and rows.max() < 2 * n, "row index out of range"
        assert cols.min() >= 0 and cols.max() < 2 * n, "col index out of range"
    top = rows < n
    left = cols < n
    rr = np.where(top, rows, rows - n)
    cc = np.where(left, cols, cols - n)
    src = np.where(top & left, 0,
                   np.where(top | left, off_code, br_code)).astype(np.int32)
    # top-right quadrant is X.T -> swap (rr, cc); other quadrants use (rr, cc).
    res_r = np.where(top & ~left, cc, rr).astype(np.int32)
    res_c = np.where(top & ~left, rr, cc).astype(np.int32)
    return src, res_r, res_c


# ----------------------------------------------------------------------------
# Fused gather kernel: one invocation, VMEM-resident Dr1/Dr2, SMEM indices.
# ----------------------------------------------------------------------------
def _fused_dgm_kernel(src_ref, row_ref, col_ref, dr1_ref, dr2_ref, out_ref,
                      *, mode, num_valid):
    n = dr1_ref.shape[1]
    w = out_ref.shape[1]
    lane_n = lax.broadcasted_iota(jnp.int32, (1, n), 1)   # column selector
    lane_w = lax.broadcasted_iota(jnp.int32, (1, w), 1)   # output slot selector

    def body(k, acc):
        s = src_ref[k]
        r = row_ref[k]
        c = col_ref[k]
        row1 = dr1_ref[pl.ds(r, 1), :]                    # (1, n) dynamic row
        row2 = dr2_ref[pl.ds(r, 1), :]
        onehot = lane_n == c
        v1 = jnp.sum(jnp.where(onehot, row1, 0.0), axis=1, keepdims=True)
        v2 = jnp.sum(jnp.where(onehot, row2, 0.0), axis=1, keepdims=True)
        if mode == "minimum":
            v12 = jnp.minimum(v1, v2)
        else:
            v12 = jnp.maximum(v1, v2)
        val = jnp.where(s == 1, v1,
                        jnp.where(s == 2, v2,
                                  jnp.where(s == 3, v12, 0.0)))
        return jnp.where(lane_w == k, val, acc)

    acc = lax.fori_loop(0, num_valid, body, jnp.zeros((1, w), jnp.float32))
    out_ref[...] = acc                                    # single lane-dense store


def fused_dgm_gather(Dr1, Dr2, src, rows, cols, *, mode):
    """Gather values of the (never materialized) DX / DX_2 matrices.

    src/rows/cols are int32 arrays of length K2 (all homological dims and both
    diagram columns concatenated).  Returns a float32 vector of length K2."""
    n = Dr1.shape[0]
    k2 = int(src.shape[0])
    w = max(128, ((k2 + 127) // 128) * 128)

    # VMEM budget: both input matrices resident + output + slack, capped below
    # physical capacity with headroom (v7x has only 64 MiB).
    needed = 2 * (4 * n * n) + 4 * w + (2 << 20)
    try:
        cap = int(getattr(pltpu.get_tpu_info(), "vmem_capacity_bytes",
                          64 * 1024 * 1024))
    except Exception:
        cap = 64 * 1024 * 1024
    limit = int(min(max(needed, 8 << 20), cap - (8 << 20)))
    # TODO(synk): for very large n (> ~2500 on v7x) Dr1/Dr2 no longer fit VMEM
    # whole; switch to per-row manual DMA gather at that point.

    smem = pl.BlockSpec(memory_space=pltpu.MemorySpace.SMEM)
    vmem = pl.BlockSpec(memory_space=pltpu.MemorySpace.VMEM)
    out = pl.pallas_call(
        functools.partial(_fused_dgm_kernel, mode=mode, num_valid=k2),
        out_shape=jax.ShapeDtypeStruct((1, w), jnp.float32),
        in_specs=[smem, smem, smem, vmem, vmem],
        out_specs=vmem,
        compiler_params=pltpu.CompilerParams(vmem_limit_bytes=limit),
    )(src.astype(jnp.int32), rows.astype(jnp.int32), cols.astype(jnp.int32),
      Dr1.astype(jnp.float32), Dr2.astype(jnp.float32))
    return out[0, :k2]


# ----------------------------------------------------------------------------
# Forward pass of RTD_differentiable_pairs.
# ----------------------------------------------------------------------------
def rtd_differentiable_pairs_forward(Dr1, Dr2, all_ids, *, dim=1, card=50,
                                     mode="minimum", immovable=None):
    """Reproduces RTD_differentiable_pairs.forward.

    `all_ids` replaces the output of Rips(DX, ...): one flat list of 4*card
    integer indices (into the virtual 2n x 2n matrix DX) per homological dim.
    Returns (all_dgms, all_pairs) exactly like the torch module."""
    n = Dr1.shape[0]

    all_pairs = []
    rows_a, cols_a, rows_b, cols_b = [], [], [], []
    for ids in all_ids:
        tmp_idx = np.reshape(np.asarray(ids, dtype=np.int64), [2 * card, 2])
        pairs_1 = tmp_idx[::2]
        pairs_2 = tmp_idx[1::2]
        pairs_1_conv = np.where(pairs_1 >= n, pairs_1 - n, pairs_1)
        pairs_2_conv = np.where(pairs_2 >= n, pairs_2 - n, pairs_2)
        all_pairs.append((pairs_1_conv, pairs_2_conv))
        rows_a.append(pairs_1[:, 0]); cols_a.append(pairs_1[:, 1])
        rows_b.append(pairs_2[:, 0]); cols_b.append(pairs_2[:, 1])

    if not all_ids:
        return [], all_pairs

    r_a = np.concatenate(rows_a); c_a = np.concatenate(cols_a)
    r_b = np.concatenate(rows_b); c_b = np.concatenate(cols_b)

    # Which n x n source fills the off-diagonal / bottom-right blocks of the
    # virtual matrices used for diagram columns A and B (torch block layout).
    if mode == "minimum":
        off_a, br_a = 1, 3                                     # DX
        off_b = 1                                              # DX_2
        br_b = 2 if immovable == 1 else (1 if immovable == 2 else 3)
    else:                                                      # 'maximum'
        off_a, br_a = 1, 2                                     # DX_2
        off_b, br_b = 3, 2                                     # DX

    src_a, rr_a, cc_a = _resolve_quadrant(r_a, c_a, n, off_a, br_a)
    src_b, rr_b, cc_b = _resolve_quadrant(r_b, c_b, n, off_b, br_b)

    k = r_a.shape[0]                                           # dims * card
    src = jnp.asarray(np.concatenate([src_a, src_b]), dtype=jnp.int32)
    rr = jnp.asarray(np.concatenate([rr_a, rr_b]), dtype=jnp.int32)
    cc = jnp.asarray(np.concatenate([cc_a, cc_b]), dtype=jnp.int32)

    flat = fused_dgm_gather(Dr1, Dr2, src, rr, cc, mode=mode)
    dgm_all = jnp.stack([flat[:k], flat[k:2 * k]], axis=1)     # (dims*card, 2)

    all_dgms = [dgm_all[i * card:(i + 1) * card] for i in range(len(all_ids))]
    return all_dgms, all_pairs


# ----------------------------------------------------------------------------
# Demo / correctness check.
# ----------------------------------------------------------------------------
if __name__ == "__main__":
    key = jax.random.PRNGKey(0)
    n = 128       # number of points -> virtual DX would be (256, 256)
    dim = 2
    card = 16

    k1, k2, k3 = jax.random.split(key, 3)
    A1 = jax.random.uniform(k1, (n, n), dtype=jnp.float32)
    A2 = jax.random.uniform(k2, (n, n), dtype=jnp.float32)
    Dr1 = (A1 + A1.T) * 0.5
    Dr2 = (A2 + A2.T) * 0.5
    Dr1 = Dr1 - jnp.diag(jnp.diag(Dr1))
    Dr2 = Dr2 - jnp.diag(jnp.diag(Dr2))

    # Deterministic synthetic stand-in for the Ripser index output.
    all_ids = []
    for d in range(1, dim + 1):
        kd = jax.random.fold_in(k3, d)
        ids = jax.random.randint(kd, (4 * card,), 0, 2 * n, dtype=jnp.int32)
        all_ids.append(np.asarray(ids))

    Dr1_np = np.asarray(Dr1)
    Dr2_np = np.asarray(Dr2)

    def numpy_reference(mode, immovable):
        Dzz = np.zeros((n, n), np.float32)
        if mode == "minimum":
            Dr12 = np.minimum(Dr1_np, Dr2_np)
            DX = np.block([[Dzz, Dr1_np.T], [Dr1_np, Dr12]])
            br = Dr2_np if immovable == 1 else (Dr1_np if immovable == 2 else Dr12)
            DX2 = np.block([[Dzz, Dr1_np.T], [Dr1_np, br]])
        else:
            Dr12 = np.maximum(Dr1_np, Dr2_np)
            DX = np.block([[Dzz, Dr12.T], [Dr12, Dr2_np]])
            DX2 = np.block([[Dzz, Dr1_np.T], [Dr1_np, Dr2_np]])
        dgms = []
        for ids in all_ids:
            tmp = np.reshape(np.asarray(ids, np.int64), [2 * card, 2])
            p1 = tmp[::2]
            p2 = tmp[1::2]
            if mode == "minimum":
                dgm = np.stack([DX[p1[:, 0], p1[:, 1]],
                                DX2[p2[:, 0], p2[:, 1]]], axis=1)
            else:
                dgm = np.stack([DX2[p1[:, 0], p1[:, 1]],
                                DX[p2[:, 0], p2[:, 1]]], axis=1)
            dgms.append(dgm.astype(np.float32))
        return dgms

    ok = True
    for mode, immovable in [("minimum", None), ("minimum", 1),
                            ("minimum", 2), ("maximum", None)]:
        dgms_ref = numpy_reference(mode, immovable)
        all_dgms, all_pairs = rtd_differentiable_pairs_forward(
            Dr1, Dr2, all_ids, dim=dim, card=card, mode=mode,
            immovable=immovable)
        for dgm in all_dgms:
            jax.block_until_ready(dgm)
        for dgm, dgm_ref in zip(all_dgms, dgms_ref):
            ok = ok and np.allclose(np.asarray(dgm), dgm_ref, atol=1e-5)
        # pairs bookkeeping sanity (host-side numpy, same as torch module)
        for (p1c, p2c) in all_pairs:
            ok = ok and (p1c.max() < n) and (p2c.max() < n)

    assert ok, "Pallas kernel output does not match numpy reference"
    print("KERNEL_OK")
</pallas_src>

<mosaic_0001>
module attributes {stable_mosaic.version = 11 : i64} {
  func.func @_fused_dgm_kernel(%arg0: memref<64xi32, #tpu.memory_space<smem>>, %arg1: memref<64xi32, #tpu.memory_space<smem>>, %arg2: memref<64xi32, #tpu.memory_space<smem>>, %arg3: memref<128x128xf32, #tpu.memory_space<vmem>>, %arg4: memref<128x128xf32, #tpu.memory_space<vmem>>, %arg5: memref<1x128xf32, #tpu.memory_space<vmem>>) attributes {dimension_semantics = [], scalar_prefetch = 0 : i64, scratch_operands = 0 : i64, tpu.core_type = #tpu.core_type<tc>} {
    %0 = tpu.iota {dimensions = array<i32: 1>} : vector<1x128xi32>
    %1 = tpu.iota {dimensions = array<i32: 1>} : vector<1x128xi32>
    %cst = arith.constant 0.000000e+00 : f32
    %2 = vector.broadcast %cst : f32 to vector<1x128xf32>
    %c0_i32 = arith.constant 0 : i32
    %c64_i32 = arith.constant 64 : i32
    %3 = arith.addi %c0_i32, %c64_i32 : i32
    %c1_i32 = arith.constant 1 : i32
    %4 = scf.for %arg6 = %c0_i32 to %3 step %c1_i32 iter_args(%arg7 = %2) -> (vector<1x128xf32>)  : i32 {
      %6 = arith.index_cast %arg6 : i32 to index
      %7 = memref.load %arg0[%6] : memref<64xi32, #tpu.memory_space<smem>>
      %8 = arith.index_cast %arg6 : i32 to index
      %9 = memref.load %arg1[%8] : memref<64xi32, #tpu.memory_space<smem>>
      %10 = arith.index_cast %arg6 : i32 to index
      %11 = memref.load %arg2[%10] : memref<64xi32, #tpu.memory_space<smem>>
      %12 = arith.index_cast %9 : i32 to index
      %c0_2 = arith.constant 0 : index
      %13 = vector.load %arg3[%12, %c0_2] : memref<128x128xf32, #tpu.memory_space<vmem>>, vector<1x128xf32>
      %14 = arith.index_cast %9 : i32 to index
      %c0_3 = arith.constant 0 : index
      %15 = vector.load %arg4[%14, %c0_3] : memref<128x128xf32, #tpu.memory_space<vmem>>, vector<1x128xf32>
      %16 = vector.broadcast %11 : i32 to vector<1x128xi32>
      %17 = arith.cmpi eq, %0, %16 : vector<1x128xi32>
      %cst_4 = arith.constant 0.000000e+00 : f32
      %18 = vector.broadcast %cst_4 : f32 to vector<1x128xf32>
      %19 = arith.select %17, %13, %18 : vector<1x128xi1>, vector<1x128xf32>
      %cst_5 = arith.constant dense<0.000000e+00> : vector<1xf32>
      %20 = vector.multi_reduction <add>, %19, %cst_5 [1] : vector<1x128xf32> to vector<1xf32>
      %21 = vector.shape_cast %20 : vector<1xf32> to vector<1x1xf32>
      %cst_6 = arith.constant 0.000000e+00 : f32
      %22 = vector.broadcast %cst_6 : f32 to vector<1x128xf32>
      %23 = arith.select %17, %15, %22 : vector<1x128xi1>, vector<1x128xf32>
      %cst_7 = arith.constant dense<0.000000e+00> : vector<1xf32>
      %24 = vector.multi_reduction <add>, %23, %cst_7 [1] : vector<1x128xf32> to vector<1xf32>
      %25 = vector.shape_cast %24 : vector<1xf32> to vector<1x1xf32>
      %26 = arith.minimumf %21, %25 : vector<1x1xf32>
      %c1_i32_8 = arith.constant 1 : i32
      %27 = arith.cmpi eq, %7, %c1_i32_8 : i32
      %c2_i32 = arith.constant 2 : i32
      %28 = arith.cmpi eq, %7, %c2_i32 : i32
      %c3_i32 = arith.constant 3 : i32
      %29 = arith.cmpi eq, %7, %c3_i32 : i32
      %cst_9 = arith.constant 0.000000e+00 : f32
      %30 = vector.broadcast %cst_9 : f32 to vector<1x1xf32>
      %31 = arith.select %29, %26, %30 : vector<1x1xf32>
      %32 = arith.select %28, %25, %31 : vector<1x1xf32>
      %33 = arith.select %27, %21, %32 : vector<1x1xf32>
      %34 = vector.broadcast %arg6 : i32 to vector<1x128xi32>
      %35 = arith.cmpi eq, %1, %34 : vector<1x128xi32>
      %36 = vector.shape_cast %33 : vector<1x1xf32> to vector<1x1xf32>
      %37 = vector.broadcast %36 : vector<1x1xf32> to vector<1x128xf32>
      %38 = arith.select %35, %37, %arg7 : vector<1x128xi1>, vector<1x128xf32>
      scf.yield %38 : vector<1x128xf32>
    }
    %c64_i32_0 = arith.constant 64 : i32
    %c0 = arith.constant 0 : index
    %c0_1 = arith.constant 0 : index
    %5 = vector.load %arg5[%c0, %c0_1] : memref<1x128xf32, #tpu.memory_space<vmem>>, vector<1x128xf32>
    tpu.vector_store %arg5[%c0, %c0_1], %4 {strides = array<i32>} : memref<1x128xf32, #tpu.memory_space<vmem>>, vector<1x128xf32>,
    return
  }
}

</mosaic_0001>

<llo_original>
// kernel: tpu_custom_call.1
$region0: #{tpu_custom_call.1}
  #allocation0 [shape = 'u32[]', space=smem, size = 0x4, offset = 0x4, fixed_abs, tag = 'smem constant byte address 0x4 - core index']
  #allocation1 [shape = 'u32[144,128]{1,0:T(1,128)}', space=vmem, size = 0x12000, scoped, tag = 'internal scratch']
  %s0 = inlined_call_operand.hbm [shape: s32[64], index: 0, kind: input, shape index: {}]
  %s1 = inlined_call_operand.vmem [shape: s32[64], index: 1, kind: input, shape index: {}]
  %s2 = inlined_call_operand.vmem [shape: s32[64], index: 2, kind: input, shape index: {}]
  %s3 = inlined_call_operand.hbm [shape: f32[128,128], index: 3, kind: input, shape index: {}]
  %s4 = inlined_call_operand.hbm [shape: f32[128,128], index: 4, kind: input, shape index: {}]
  %s5 = inlined_call_operand.hbm [shape: f32[1,128], index: 5, kind: output, shape index: {}]
  %s6 = sld [smem:[#allocation0]]
  $region57: #{tpu_custom_call.1} parent=0
    _
  %s8 = ssub.s32 1, %s6
  %s9 = scalar_select 0, %s8, %s6
  $region1: #{tpu_custom_call.1} parent=0
    #allocation2 [shape = 'u8[512]{0}', space=smem, size = 0x200, scoped, tag = 'input window, operand 0, single buffered']
    #allocation3 [shape = 's32[1]{0}', space=sflag, size = 0x4, scoped, tag = 'scoped memory for tpu_custom_call.1']
    #allocation4 [shape = 's32[1]{0}', space=sflag, size = 0x4, scoped, tag = 'scoped memory for tpu_custom_call.1']
    #allocation5 [shape = 's32[1]{0}', space=sflag, size = 0x4, scoped, tag = 'scoped memory for tpu_custom_call.1']
    #allocation6 [shape = 's32[1]{0}', space=sflag, size = 0x4, scoped, tag = 'scoped memory for tpu_custom_call.1']
    #allocation7 [shape = 'u8[512]{0}', space=smem, size = 0x200, scoped, tag = 'input window, operand 1, single buffered']
    #allocation8 [shape = 'u8[512]{0}', space=smem, size = 0x200, scoped, tag = 'input window, operand 2, single buffered']
    #allocation9 [shape = 's32[1]{0}', space=sflag, size = 0x4, scoped, tag = 'scoped memory for tpu_custom_call.1']
    #allocation10 [shape = 'u8[65536]{0}', space=vmem, size = 0x10000, scoped, tag = 'input window, operand 3, single buffered']
    #allocation11 [shape = 'u8[65536]{0}', space=vmem, size = 0x10000, scoped, tag = 'input window, operand 4, single buffered']
    #allocation12 [shape = 's32[1]{0}', space=sflag, size = 0x4, scoped, tag = 'scoped memory for tpu_custom_call.1']
    #allocation13 [shape = 'u8[512]{0}', space=vmem, size = 0x400, scoped, tag = 'output window, operand 0, single buffered']
    %10 = vsyncpa [#allocation5], 0
    %11 = vsyncpa [#allocation6], 0
    %12 = vsyncpa [#allocation9], 0
    %13 = vsyncpa [#allocation3], 0
    %14 = vsyncpa [#allocation12], 0
    %15 = vsyncpa [#allocation4], 0
    // Predicated region
    $region2: #{tpu_custom_call.1} parent=1 // pred_check
      _
    $region3: #{tpu_custom_call.1} parent=1 // pred_check_branch
      %17 = sbr.rel (0) target = $region5
    $region4: #{tpu_custom_call.1} parent=1 // pred_region
      %s19 = ssub.s32 16, 16
      %20 = vsyncadd [#allocation5], %s19
      %23 = dma.hbm_to_smem %s0, 16, [#allocation2], [#allocation5]
    $region5: #{tpu_custom_call.1} parent=1 // pred_fallthru
      _
    // Predicated region
    $region6: #{tpu_custom_call.1} parent=1 // pred_check
      _
    $region7: #{tpu_custom_call.1} parent=1 // pred_check_branch
      %25 = sbr.rel (0) target = $region9
    $region8: #{tpu_custom_call.1} parent=1 // pred_region
      %s27 = ssub.s32 16, 16
      %28 = vsyncadd [#allocation6], %s27
      %s30 = sshll.u32 %s1, 4
      %s31 = int_to_ptr.vmem [resolvable:$true] %s30
      %33 = dma.vmem_to_smem %s31, 16, [#allocation7], [#allocation6]
    $region9: #{tpu_custom_call.1} parent=1 // pred_fallthru
      _
    // Predicated region
    $region10: #{tpu_custom_call.1} parent=1 // pred_check
      _
    $region11: #{tpu_custom_call.1} parent=1 // pred_check_branch
      %35 = sbr.rel (0) target = $region13
    $region12: #{tpu_custom_call.1} parent=1 // pred_region
      %s37 = ssub.s32 16, 16
      %38 = vsyncadd [#allocation9], %s37
      %s40 = sshll.u32 %s2, 4
      %s41 = int_to_ptr.vmem [resolvable:$true] %s40
      %43 = dma.vmem_to_smem %s41, 16, [#allocation8], [#allocation9]
    $region13: #{tpu_custom_call.1} parent=1 // pred_fallthru
      _
    // Predicated region
    $region14: #{tpu_custom_call.1} parent=1 // pred_check
      _
    $region15: #{tpu_custom_call.1} parent=1 // pred_check_branch
      %45 = sbr.rel (0) target = $region17
    $region16: #{tpu_custom_call.1} parent=1 // pred_region
      %s47 = ssub.s32 2048, 2048
      %48 = vsyncadd [#allocation3], %s47
      %s49 = sshll.u32 [#allocation10], 4
      %s50 = int_to_ptr.vmem [resolvable:$true] %s49
      %55 = dma.hbm_to_vmem [thread:$0]  %s3, 2048, %s50, [#allocation3], 128, 128, 8
    $region17: #{tpu_custom_call.1} parent=1 // pred_fallthru
      _
    // Predicated region
    $region18: #{tpu_custom_call.1} parent=1 // pred_check
      _
    $region19: #{tpu_custom_call.1} parent=1 // pred_check_branch
      %57 = sbr.rel (0) target = $region21
    $region20: #{tpu_custom_call.1} parent=1 // pred_region
      %s59 = ssub.s32 2048, 2048
      %60 = vsyncadd [#allocation12], %s59
      %s61 = sshll.u32 [#allocation11], 4
      %s62 = int_to_ptr.vmem [resolvable:$true] %s61
      %67 = dma.hbm_to_vmem [thread:$0]  %s4, 2048, %s62, [#allocation12], 128, 128, 8
    $region21: #{tpu_custom_call.1} parent=1 // pred_fallthru
      _
    // Predicated region
    $region22: #{tpu_custom_call.1} parent=1 // pred_check
      _
    $region23: #{tpu_custom_call.1} parent=1 // pred_check_branch
      %69 = sbr.rel (0) target = $region25
    $region24: #{tpu_custom_call.1} parent=1 // pred_region
      %70 = dma.done [#allocation5], 16
    $region25: #{tpu_custom_call.1} parent=1 // pred_fallthru
      _
    // Predicated region
    $region26: #{tpu_custom_call.1} parent=1 // pred_check
      _
    $region27: #{tpu_custom_call.1} parent=1 // pred_check_branch
      %72 = sbr.rel (0) target = $region29
    $region28: #{tpu_custom_call.1} parent=1 // pred_region
      %73 = dma.done [#allocation6], 16
    $region29: #{tpu_custom_call.1} parent=1 // pred_fallthru
      _
    // Predicated region
    $region30: #{tpu_custom_call.1} parent=1 // pred_check
      _
    $region31: #{tpu_custom_call.1} parent=1 // pred_check_branch
      %75 = sbr.rel (0) target = $region33
    $region32: #{tpu_custom_call.1} parent=1 // pred_region
      %76 = dma.done [#allocation9], 16
    $region33: #{tpu_custom_call.1} parent=1 // pred_fallthru
      _
    // Predicated region
    $region34: #{tpu_custom_call.1} parent=1 // pred_check
      _
    $region35: #{tpu_custom_call.1} parent=1 // pred_check_branch
      %78 = sbr.rel (0) target = $region37
    $region36: #{tpu_custom_call.1} parent=1 // pred_region
      %79 = dma.done [#allocation3], 2048
    $region37: #{tpu_custom_call.1} parent=1 // pred_fallthru
      _
    // Predicated region
    $region38: #{tpu_custom_call.1} parent=1 // pred_check
      _
    $region39: #{tpu_custom_call.1} parent=1 // pred_check_branch
      %81 = sbr.rel (0) target = $region41
    $region40: #{tpu_custom_call.1} parent=1 // pred_region
      %82 = dma.done [#allocation12], 2048
    $region41: #{tpu_custom_call.1} parent=1 // pred_fallthru
      _
    %83 = sfence
    %v84 = vlaneseq
    %v85 = vand.u32 %v84, 127
    loop: start=0, step=1, limit=64
    $region42: #{tpu_custom_call.1} parent=1 // loop_pre_header
      _
    $region43: #{tpu_custom_call.1} parent=1 // loop_header
      %s87 = sphi 0, %s91
      %p88 = scmp.ge.s32.totalorder %s87, 64
      %v92 = vphi 0.0, %v129
    $region44: #{tpu_custom_call.1} parent=1 // loop_header_branch
      %90 = sbr.rel (%p88) target = $region48
    $region45: #{tpu_custom_call.1} parent=1 // loop_body
      %s93 = sld [smem:[#allocation2 + %s87]]
      %s94 = sld [smem:[#allocation7 + %s87]]
      %s95 = sld [smem:[#allocation8 + %s87]]
      %s96 = scalar_lea.vmem [#allocation10], %s94
      %v97 = vld [vmem:[%s96] sm:$0x1]
      %s98 = scalar_lea.vmem [#allocation11], %s94
      %v99 = vld [vmem:[%s98] sm:$0x1]
      %v100 = vstv %s95
      %vm101 = vcmp.eq.s32.totalorder %v85, %v100
      %v102 = vsel %vm101, %v97, 0.0
      %vm103 = vcmask 1040384
      %v104 = vsel %vm103, %v102, 0.0
      %105 = vadd.xlane.f32.xlu0 %v104
      %v106 = vpop.xlane.xlu0 %105
      %v107 = vsel %vm101, %v99, 0.0
      %v108 = vsel %vm103, %v107, 0.0
      %109 = vadd.xlane.f32.xlu0 %v108
      %v110 = vpop.xlane.xlu0 %109
      %v111 = vmin.f32 %v106, %v110
      %p112 = scmp.eq.s32.totalorder %s93, 1
      %p113 = scmp.eq.s32.totalorder %s93, 2
      %p114 = scmp.eq.s32.totalorder %s93, 3
      %s115 = scalar_select %p114, 1, 0
      %v116 = vstv %s115
      %vm117 = vcmp.eq.s32.totalorder %v116, 1
      %v118 = vsel %vm117, %v111, 0.0
      %s119 = scalar_select %p113, 1, 0
      %v120 = vstv %s119
      %vm121 = vcmp.eq.s32.totalorder %v120, 1
      %v122 = vsel %vm121, %v110, %v118
      %s123 = scalar_select %p112, 1, 0
      %v124 = vstv %s123
      %vm125 = vcmp.eq.s32.totalorder %v124, 1
      %v126 = vsel %vm125, %v106, %v122
      %v127 = vstv %s87
      %vm128 = vcmp.eq.s32.totalorder %v85, %v127
      %v129 = vsel %vm128, %v126, %v92
    $region46: #{tpu_custom_call.1} parent=1 // loop_footer
      %s91 = sadd.s32 1, %s87
    $region47: #{tpu_custom_call.1} parent=1 // loop_footer_branch
      %86 = sbr.rel target = $region43
    $region48: #{tpu_custom_call.1} parent=1 // loop_exit
      _
    %130 = vst [vmem:[#allocation13] sm:$0x1] %v92
    // Predicated region
    $region49: #{tpu_custom_call.1} parent=1 // pred_check
      _
    $region50: #{tpu_custom_call.1} parent=1 // pred_check_branch
      %132 = sbr.rel (0) target = $region52
    $region51: #{tpu_custom_call.1} parent=1 // pred_region
      %s134 = ssub.s32 16, 16
      %135 = vsyncadd [#allocation4], %s134
      %s137 = sshll.u32 [#allocation13], 4
      %s138 = int_to_ptr.vmem [resolvable:$true] %s137
      %140 = dma.vmem_to_hbm [thread:$0]  %s138, 16, %s5, [#allocation4]
    $region52: #{tpu_custom_call.1} parent=1 // pred_fallthru
      _
    // Predicated region
    $region53: #{tpu_custom_call.1} parent=1 // pred_check
      _
    $region54: #{tpu_custom_call.1} parent=1 // pred_check_branch
      %142 = sbr.rel (0) target = $region56
    $region55: #{tpu_custom_call.1} parent=1 // pred_region
      %143 = dma.done [#allocation4], 16
    $region56: #{tpu_custom_call.1} parent=1 // pred_fallthru
      _
    %144 = vsyncpa [#allocation3], 1
    %145 = vsyncpa [#allocation12], 1
    %146 = vsyncpa [#allocation4], 1
    %147 = vsyncpa [#allocation5], 1
    %148 = vsyncpa [#allocation6], 1
    %149 = vsyncpa [#allocation9], 1

</llo_original>
